<compile_context>
chip_gen: v7x
topology: tpu7x:2x2x1
jax: 0.10.0
libtpu: 0.0.40
codegen_flags: <defaults>
</compile_context>

<pallas_src>
import math

import jax
import jax.numpy as jnp
from jax.experimental import pallas as pl
from jax.experimental.pallas import tpu as pltpu


_VMEM_LIMIT_BYTES = 32 * 1024 * 1024   # <= v7x physical (64 MiB), raises v5e scoped (16 MiB)
_VMEM_TILE_BUDGET = 24 * 1024 * 1024   # for double-buffered input+output tiles
_PALLAS_MIN_BYTES = 4 * 1024 * 1024    # below this, let XLA fuse the matvec


def _feature_matvec_kernel(x_ref, w_ref, b_ref, o_ref):
    # x_ref: (TR, P*D) VMEM   w_ref: (P*D, P) VMEM (resident)   b_ref: (1,1) SMEM
    # o_ref: (TR, P) VMEM
    acc = jnp.dot(x_ref[...], w_ref[...], preferred_element_type=jnp.float32)
    o_ref[...] = (acc + b_ref[0, 0]).astype(o_ref.dtype)


def _round_up(n, m):
    return ((n + m - 1) // m) * m


def _sublane_granule(itemsize):
    return {4: 8, 2: 16, 1: 32}.get(itemsize, 8)


def _choose_block_rows(n_rows, in_cols, out_cols, itemsize):
    """Pick the packed-row tile height TR."""
    g = _sublane_granule(itemsize)
    in_row_bytes = _round_up(in_cols, 128) * itemsize   # VMEM lane-padded row
    out_row_bytes = _round_up(out_cols, 128) * itemsize
    per_row = 2 * (in_row_bytes + out_row_bytes)         # double-buffered in + out
    tr = max(g, (_VMEM_TILE_BUDGET // per_row) // g * g)
    # Keep >= 4 grid steps when the batch is large enough (v7x dual-TC sharding).
    tr = min(tr, _round_up(pl.cdiv(n_rows, 4), g))
    if tr >= n_rows:
        return n_rows      # single block equal to the full dim is always legal
    return tr


def feature_forward_pallas(data, weight, bias, block_rows=None):
    """Pallas path of Feature.forward: data (B, D), weight (1, D), bias (1,)."""
    B, D = data.shape
    dt = data.dtype
    itemsize = jnp.dtype(dt).itemsize

    # Lane-packing factor: P consecutive batch rows per 128-lane row (free,
    # row-major reshape) whenever P divides B.
    P = math.gcd(B, max(1, 128 // D)) if D < 128 else 1
    P = max(P, 1)
    rows, cols = B // P, P * D

    x = data.reshape(rows, cols)                       # bitcast-style reshape
    w = weight.reshape(1, D).astype(dt)
    if P > 1:
        # Block-diagonal weight: Wsel[j*D + d, j] = w[d]  ->  matmul does the
        # per-row weighted reduce for P batch rows at once.
        wsel = jnp.kron(jnp.eye(P, dtype=dt), w.reshape(D, 1))   # (P*D, P)
    else:
        wsel = w.reshape(D, 1)                                   # (D, 1)

    tr = block_rows or _choose_block_rows(rows, cols, P, itemsize)
    grid = pl.cdiv(rows, tr)

    out = pl.pallas_call(
        _feature_matvec_kernel,
        out_shape=jax.ShapeDtypeStruct((rows, P), dt),
        grid=(grid,),
        in_specs=[
            pl.BlockSpec((tr, cols), lambda i: (i, 0)),            # batch tile
            pl.BlockSpec((cols, P), lambda i: (0, 0)),             # resident weight
            pl.BlockSpec(memory_space=pltpu.MemorySpace.SMEM),     # scalar bias
        ],
        out_specs=pl.BlockSpec((tr, P), lambda i: (i, 0)),
        compiler_params=pltpu.CompilerParams(
            dimension_semantics=("parallel",),
            vmem_limit_bytes=_VMEM_LIMIT_BYTES,
        ),
        cost_estimate=pl.CostEstimate(
            flops=2 * B * D,
            transcendentals=0,
            bytes_accessed=itemsize * (B * D + cols * P + B),
        ),
    )(x, wsel, bias.reshape(1, 1).astype(jnp.float32))

    return out.reshape(B, 1)


def feature_forward(data, weight, bias):
    """Size-thresholded dispatcher: tiny inputs go to plain (fused) XLA."""
    B, D = data.shape
    if B * D * jnp.dtype(data.dtype).itemsize < _PALLAS_MIN_BYTES:
        return (data @ weight.T + bias).astype(data.dtype)
    return feature_forward_pallas(data, weight, bias)


if __name__ == "__main__":
    # Module config: Feature(dropout_ratio=0.5, n_input_dim=32)
    # dropout_ratio is unused in the reference module's forward path.
    n_input_dim = 32
    batch = 32      # small demo; packs 4 rows per 128-lane row -> 8 packed rows

    key = jax.random.PRNGKey(0)
    k_x, k_w, k_b, k_x2, k_x3 = jax.random.split(key, 5)

    # Deterministic init mimicking nn.Linear default (uniform +-1/sqrt(D)).
    bound = 1.0 / math.sqrt(n_input_dim)
    weight = jax.random.uniform(k_w, (1, n_input_dim), jnp.float32, -bound, bound)
    bias = jax.random.uniform(k_b, (1,), jnp.float32, -bound, bound)
    data = jax.random.normal(k_x, (batch, n_input_dim), jnp.float32)

    # Small configured shape: exercises the packed single-tile Pallas path.
    out = jax.block_until_ready(feature_forward_pallas(data, weight, bias))
    ref = data @ weight.T + bias
    assert out.shape == (batch, 1)
    assert jnp.allclose(out, ref, atol=1e-5, rtol=1e-5)

    # Larger ragged batch: packed path, multi-step parallel grid, ragged last
    # block handled without any input padding.
    data_big = jax.random.normal(k_x2, (4100, n_input_dim), jnp.float32)
    out_big = jax.block_until_ready(feature_forward_pallas(data_big, weight, bias))
    ref_big = data_big @ weight.T + bias
    assert out_big.shape == (4100, 1)
    assert jnp.allclose(out_big, ref_big, atol=1e-4, rtol=1e-4)

    # Batch not divisible by the packing factor -> unpacked (P=1) ragged path.
    data_odd = jax.random.normal(k_x3, (1001, n_input_dim), jnp.float32)
    out_odd = jax.block_until_ready(feature_forward_pallas(data_odd, weight, bias))
    ref_odd = data_odd @ weight.T + bias
    assert out_odd.shape == (1001, 1)
    assert jnp.allclose(out_odd, ref_odd, atol=1e-4, rtol=1e-4)

    # Dispatcher path (tiny problem -> plain XLA, per review).
    out_disp = jax.block_until_ready(feature_forward(data, weight, bias))
    assert jnp.allclose(out_disp, ref, atol=1e-5, rtol=1e-5)

    print("KERNEL_OK")
</pallas_src>

<mosaic_0001>
module attributes {stable_mosaic.version = 11 : i64} {
  func.func @_feature_matvec_kernel(%arg0: i32, %arg1: memref<8x128xf32, #tpu.memory_space<vmem>>, %arg2: memref<128x4xf32, #tpu.memory_space<vmem>>, %arg3: memref<1x1xf32, #tpu.memory_space<smem>>, %arg4: memref<8x4xf32, #tpu.memory_space<vmem>>) attributes {dimension_semantics = [#tpu.dimension_semantics<parallel>], iteration_bounds = array<i64: 1>, scalar_prefetch = 0 : i64, scratch_operands = 0 : i64, tpu.core_type = #tpu.core_type<tc>, window_params = [{transform_indices = @transform_0, window_bounds = array<i64: 8, 128>}, {pipeline_mode = #tpu.pipeline_mode<synchronous>, transform_indices = @transform_1, window_bounds = array<i64: 128, 4>}, {transform_indices = @transform_2, window_bounds = array<i64: 1, 1>}, {transform_indices = @transform_3, window_bounds = array<i64: 8, 4>}]} {
    %c0 = arith.constant 0 : index
    %c0_0 = arith.constant 0 : index
    %0 = vector.load %arg1[%c0, %c0_0] : memref<8x128xf32, #tpu.memory_space<vmem>>, vector<8x128xf32>
    %c0_1 = arith.constant 0 : index
    %c0_2 = arith.constant 0 : index
    %1 = vector.load %arg2[%c0_1, %c0_2] : memref<128x4xf32, #tpu.memory_space<vmem>>, vector<128x4xf32>
    %cst = arith.constant dense<0.000000e+00> : vector<8x4xf32>
    %2 = tpu.matmul %0, %1, %cst {dimension_numbers = #tpu.dot_dimension_numbers<[1], [0], [0], [1], [0, 0, 1, 1], [], []>} : vector<8x128xf32>, vector<128x4xf32>, vector<8x4xf32> -> vector<8x4xf32>
    %c0_3 = arith.constant 0 : index
    %c0_4 = arith.constant 0 : index
    %3 = memref.load %arg3[%c0_3, %c0_4] : memref<1x1xf32, #tpu.memory_space<smem>>
    %4 = vector.broadcast %3 : f32 to vector<8x4xf32>
    %5 = arith.addf %2, %4 : vector<8x4xf32>
    %c0_5 = arith.constant 0 : index
    %c0_6 = arith.constant 0 : index
    %6 = vector.load %arg4[%c0_5, %c0_6] : memref<8x4xf32, #tpu.memory_space<vmem>>, vector<8x4xf32>
    tpu.vector_store %arg4[%c0_5, %c0_6], %5 {strides = array<i32>} : memref<8x4xf32, #tpu.memory_space<vmem>>, vector<8x4xf32>,
    return
  }
  func.func @transform_0(%arg0: i32) -> (i32, i32) {
    %c0_i32 = arith.constant 0 : i32
    %c0_i32_0 = arith.constant 0 : i32
    return %arg0, %c0_i32 : i32, i32
  }
  func.func @transform_1(%arg0: i32) -> (i32, i32) {
    %c0_i32 = arith.constant 0 : i32
    %c0_i32_0 = arith.constant 0 : i32
    %c0_i32_1 = arith.constant 0 : i32
    return %c0_i32, %c0_i32_0 : i32, i32
  }
  func.func @transform_2(%arg0: i32) -> (i32, i32) {
    %c0_i32 = arith.constant 0 : i32
    %c0_i32_0 = arith.constant 0 : i32
    %c0_i32_1 = arith.constant 0 : i32
    return %c0_i32, %c0_i32_0 : i32, i32
  }
  func.func @transform_3(%arg0: i32) -> (i32, i32) {
    %c0_i32 = arith.constant 0 : i32
    %c0_i32_0 = arith.constant 0 : i32
    return %arg0, %c0_i32 : i32, i32
  }
}

</mosaic_0001>

<llo_original>
// kernel: tpu_custom_call.1
$region0: #{tpu_custom_call.1}
  #allocation0 [shape = 'u32[]', space=smem, size = 0x4, offset = 0x4, fixed_abs, tag = 'smem constant byte address 0x4 - core index']
  #allocation1 [shape = 'u32[144,128]{1,0:T(1,128)}', space=vmem, size = 0x12000, scoped, tag = 'internal scratch']
  #allocation2 [shape = 'f32[1,1]{1,0:T(1,128)S(6)}', space=smem, size = 0x200, scoped, tag = 'scoped memory for tpu_custom_call.1']
  %s0 = inlined_call_operand.vmem [shape: f32[8,128], index: 0, kind: input, shape index: {}]
  %s1 = inlined_call_operand.vmem [shape: f32[128,4], index: 1, kind: input, shape index: {}]
  %s2 = inlined_call_operand.<no memory space> [shape: f32[1,1], index: 2, kind: input, shape index: {}]
  %s3 = inlined_call_operand.vmem [shape: f32[8,4], index: 3, kind: output, shape index: {}]
  %s4 = sld [smem:[#allocation0]]
  $region22: #{tpu_custom_call.1} parent=0
    _
  %s6 = ssub.s32 1, %s4
  %s7 = scalar_select 0, %s6, %s4
  %8 = sst [smem:[#allocation2]] %s2
  // Predicated region
  $region2: #{tpu_custom_call.1} parent=0 // pred_check
    _
  $region3: #{tpu_custom_call.1} parent=0 // pred_check_branch
    %10 = sbr.rel (0) target = $region5
  $region4: #{tpu_custom_call.1} parent=0 // pred_region
    _
  $region5: #{tpu_custom_call.1} parent=0 // pred_fallthru
    _
  // Predicated region
  $region6: #{tpu_custom_call.1} parent=0 // pred_check
    _
  $region7: #{tpu_custom_call.1} parent=0 // pred_check_branch
    %12 = sbr.rel (0) target = $region9
  $region8: #{tpu_custom_call.1} parent=0 // pred_region
    _
  $region9: #{tpu_custom_call.1} parent=0 // pred_fallthru
    _
  // Predicated region
  $region10: #{tpu_custom_call.1} parent=0 // pred_check
    _
  $region11: #{tpu_custom_call.1} parent=0 // pred_check_branch
    %14 = sbr.rel (0) target = $region13
  $region12: #{tpu_custom_call.1} parent=0 // pred_region
    _
  $region13: #{tpu_custom_call.1} parent=0 // pred_fallthru
    _
  %v15 = vld [vmem:[%s0] sm:$0xff]
  %v16 = vld [vmem:[%s1] sm:$0xff]
  %v17 = vld [vmem:[%s1 + $0x8] sm:$0xff]
  %v18 = vld [vmem:[%s1 + $0x10] sm:$0xff]
  %v19 = vld [vmem:[%s1 + $0x18] sm:$0xff]
  %v20 = vld [vmem:[%s1 + $0x20] sm:$0xff]
  %v21 = vld [vmem:[%s1 + $0x28] sm:$0xff]
  %v22 = vld [vmem:[%s1 + $0x30] sm:$0xff]
  %v23 = vld [vmem:[%s1 + $0x38] sm:$0xff]
  %v24 = vld [vmem:[%s1 + $0x40] sm:$0xff]
  %v25 = vld [vmem:[%s1 + $0x48] sm:$0xff]
  %v26 = vld [vmem:[%s1 + $0x50] sm:$0xff]
  %v27 = vld [vmem:[%s1 + $0x58] sm:$0xff]
  %v28 = vld [vmem:[%s1 + $0x60] sm:$0xff]
  %v29 = vld [vmem:[%s1 + $0x68] sm:$0xff]
  %v30 = vld [vmem:[%s1 + $0x70] sm:$0xff]
  %v31 = vld [vmem:[%s1 + $0x78] sm:$0xff]
  %s32 = sld [smem:[#allocation2]]
  %v33 = vstv %s32
  %34 = vmatprep.subr.mxu0 0.0
  %35 = vmatpush1.msra.mxu0 %v16
  %36 = vmatprep.subr.mxu0 0.0
  %37 = vmatpush1.msra.mxu0 %v17
  %38 = vmatprep.subr.mxu0 0.0
  %39 = vmatpush1.msra.mxu0 %v18
  %40 = vmatprep.subr.mxu0 0.0
  %41 = vmatpush1.msra.mxu0 %v19
  %42 = vmatprep.subr.mxu0 0.0
  %43 = vmatpush1.msra.mxu0 %v20
  %44 = vmatprep.subr.mxu0 0.0
  %45 = vmatpush1.msra.mxu0 %v21
  %46 = vmatprep.subr.mxu0 0.0
  %47 = vmatpush1.msra.mxu0 %v22
  %48 = vmatprep.subr.mxu0 0.0
  %49 = vmatpush1.msra.mxu0 %v23
  %50 = vmatprep.subr.mxu0 0.0
  %51 = vmatpush1.msra.mxu0 %v24
  %52 = vmatprep.subr.mxu0 0.0
  %53 = vmatpush1.msra.mxu0 %v25
  %54 = vmatprep.subr.mxu0 0.0
  %55 = vmatpush1.msra.mxu0 %v26
  %56 = vmatprep.subr.mxu0 0.0
  %57 = vmatpush1.msra.mxu0 %v27
  %58 = vmatprep.subr.mxu0 0.0
  %59 = vmatpush1.msra.mxu0 %v28
  %60 = vmatprep.subr.mxu0 0.0
  %61 = vmatpush1.msra.mxu0 %v29
  %62 = vmatprep.subr.mxu0 0.0
  %63 = vmatpush1.msra.mxu0 %v30
  %64 = vmatprep.subr.mxu0 0.0
  %65 = vmatpush1.msra.mxu0 %v31
  %66 = vmatprep.subr.mxu0 0.0
  %67 = vmatpush1.msra.mxu0 0.0
  %68 = vmatprep.subr.mxu0 0.0
  %69 = vmatpush1.msra.mxu0 0.0
  %70 = vmatprep.subr.mxu0 0.0
  %71 = vmatpush1.msra.mxu0 0.0
  %72 = vmatprep.subr.mxu0 0.0
  %73 = vmatpush1.msra.mxu0 0.0
  %74 = vmatprep.subr.mxu0 0.0
  %75 = vmatpush1.msra.mxu0 0.0
  %76 = vmatprep.subr.mxu0 0.0
  %77 = vmatpush1.msra.mxu0 0.0
  %78 = vmatprep.subr.mxu0 0.0
  %79 = vmatpush1.msra.mxu0 0.0
  %80 = vmatprep.subr.mxu0 0.0
  %81 = vmatpush1.msra.mxu0 0.0
  %82 = vmatprep.subr.mxu0 0.0
  %83 = vmatpush1.msra.mxu0 0.0
  %84 = vmatprep.subr.mxu0 0.0
  %85 = vmatpush1.msra.mxu0 0.0
  %86 = vmatprep.subr.mxu0 0.0
  %87 = vmatpush1.msra.mxu0 0.0
  %88 = vmatprep.subr.mxu0 0.0
  %89 = vmatpush1.msra.mxu0 0.0
  %90 = vmatprep.subr.mxu0 0.0
  %91 = vmatpush1.msra.mxu0 0.0
  %92 = vmatprep.subr.mxu0 0.0
  %93 = vmatpush1.msra.mxu0 0.0
  %94 = vmatprep.subr.mxu0 0.0
  %95 = vmatpush1.msra.mxu0 0.0
  %96 = vmatprep.subr.mxu0 0.0
  %97 = vmatpush1.msra.mxu0 0.0
  %98 = vmatprep.mubr.f32.mxu0 0.0
  %99 = vmatmul.mubr.f32.gmra.mrb[0].mxu0 %v15
  %v100 = vpop.f32.mrb[0].mxu0
  %v101 = vadd.f32 %v33, %v100
  %v102 = vpop.f32.mrb[0].mxu0
  %103 = vdwg.mxu0
  %vm104 = vcmask 31744
  %105 = vst.msk [vmem:[%s3] sm:$0xff] %vm104, %v101
  // Predicated region
  $region14: #{tpu_custom_call.1} parent=0 // pred_check
    _
  $region15: #{tpu_custom_call.1} parent=0 // pred_check_branch
    %107 = sbr.rel (0) target = $region17
  $region16: #{tpu_custom_call.1} parent=0 // pred_region
    _
  $region17: #{tpu_custom_call.1} parent=0 // pred_fallthru
    _
  // Predicated region
  $region18: #{tpu_custom_call.1} parent=0 // pred_check
    _
  $region19: #{tpu_custom_call.1} parent=0 // pred_check_branch
    %109 = sbr.rel (0) target = $region21
  $region20: #{tpu_custom_call.1} parent=0 // pred_region
    _
  $region21: #{tpu_custom_call.1} parent=0 // pred_fallthru
    _

</llo_original>
